<compile_context>
chip_gen: v7x
topology: tpu7x:2x2x1
jax: 0.10.0
libtpu: 0.0.40
codegen_flags: <defaults>
</compile_context>

<pallas_src>
import functools
import itertools
from concurrent.futures import ThreadPoolExecutor

import numpy as np
import jax
import jax.numpy as jnp
from jax.experimental import pallas as pl
from jax.experimental.pallas import tpu as pltpu

try:  # prefer scipy's exact solver when present
    from scipy.optimize import linear_sum_assignment as _scipy_lsa
except Exception:  # pragma: no cover
    _scipy_lsa = None

_LANES = 128  # TPU lane width; batch tile must be a multiple of this for dense vregs


def _round_up(x, m):
    return ((x + m - 1) // m) * m


# ----------------------------------------------------------------------------
# Pallas kernel: batched pairwise L1 distance, batch packed onto the lane axis
# ----------------------------------------------------------------------------
def _l1_cdist_kernel(x_ref, c_ref, *, n_tgt, n_out, feat):
    """One block of TB batches, batch on the lane axis.

    x_ref: (feat, n_tgt + n_out, TB)  rows [0, n_tgt) are targets,
           rows [n_tgt, n_tgt + n_out) are outputs; x_ref[d, q, b].
    c_ref: (n_out, n_tgt, TB)         c_ref[j, i, b] = C[b, i, j].
    """
    # n_out/feat are tiny statics here; for larger problems (n_out or feat >~ 16)
    # this unrolled Python loop should become a lax.fori_loop with modest unroll to
    # keep code size / live ranges flat (the kernel is memory-bound either way).
    for j in range(n_out):
        acc = None
        for d in range(feat):
            # Loads are re-issued per iteration instead of hoisted across the
            # unrolled loops: keeps the live vreg set tiny even at TB=8192, and
            # VMEM load bandwidth is nowhere near binding (kernel is DMA-bound).
            t = x_ref[d, 0:n_tgt, :]                       # (n_tgt, TB)
            o = x_ref[d, n_tgt + j:n_tgt + j + 1, :]       # (1, TB) output row j
            diff = jnp.abs(t - o)                          # sublane broadcast, VPU
            acc = diff if acc is None else acc + diff
        c_ref[j] = acc                                     # full (n_tgt, TB) unmasked store


def _choose_tiling(bs, n_tgt, n_out, feat):
    """Pick (batch tile TB, number of blocks).

    TB is a multiple of 128 lanes, sized as large as VMEM allows (up to 8192) so
    the ~0.35 us/grid-step overhead is amortized; large batches keep >= 2 blocks
    so both v7x TensorCores get work.  Padding is minimized by choosing TB from
    the block count rather than padding bs to a multiple of a fixed TB.
    """
    bytes_per_batch = 4 * (feat * (n_tgt + n_out) + n_tgt * n_out)  # in + out
    # double-buffered (in + out) blocks must fit the smallest scoped-VMEM default
    # (v5e: 16 MiB) with headroom for Mosaic's internal temporaries.
    budget = 12 * 1024 * 1024
    cap = (budget // (2 * bytes_per_batch)) // _LANES * _LANES
    cap = int(max(_LANES, min(cap, 8192)))

    bs_r = _round_up(bs, _LANES)
    nblk = pl.cdiv(bs_r, cap)
    # For big batches that would otherwise be a single block, split in two so both
    # v7x TensorCores get work; only when each block stays large enough (>= 2048
    # batches ~ 1 MiB) that the extra grid step is negligible on v5e/v6e too.
    if nblk == 1 and bs_r >= 2 * 2048:
        nblk = 2
    tb = _round_up(pl.cdiv(bs, nblk), _LANES)
    return tb, nblk


@functools.partial(jax.jit, static_argnames=("tb", "nblk"))
def _l1_cdist_native_impl(targets, outputs, tb, nblk):
    bs, n, d = targets.shape
    _, m, _ = outputs.shape
    bs_pad = tb * nblk

    # Single relayout pass: concat targets/outputs along the query axis, go
    # feature-major with batch on the lane axis, pad lanes only when ragged.
    x = jnp.concatenate([targets, outputs], axis=1)        # (bs, n+m, d)
    x = jnp.transpose(x, (2, 1, 0))                        # (d, n+m, bs)
    if bs_pad != bs:
        x = jnp.pad(x, ((0, 0), (0, 0), (0, bs_pad - bs)))

    kernel = functools.partial(_l1_cdist_kernel, n_tgt=n, n_out=m, feat=d)
    # Output stays in the kernel's native (m, n, bs_pad) layout — no device-side
    # transpose back; the host slices/transposes per batch before the LSA solve.
    return pl.pallas_call(
        kernel,
        out_shape=jax.ShapeDtypeStruct((m, n, bs_pad), jnp.float32),
        grid_spec=pltpu.PrefetchScalarGridSpec(
            num_scalar_prefetch=0,
            grid=(nblk,),
            in_specs=[pl.BlockSpec((d, n + m, tb), lambda b: (0, 0, b))],
            out_specs=pl.BlockSpec((m, n, tb), lambda b: (0, 0, b)),
        ),
        compiler_params=pltpu.CompilerParams(
            dimension_semantics=("parallel",),
        ),
    )(x)


def _l1_cdist_native(targets, outputs):
    """Native-layout cost: returns (n_out, n_tgt, bs_pad) f32 with
    result[j, i, b] = sum_d |targets[b,i,d] - outputs[b,j,d]| for b < bs."""
    targets = jnp.asarray(targets, jnp.float32)
    outputs = jnp.asarray(outputs, jnp.float32)
    assert targets.ndim == 3 and outputs.ndim == 3
    assert targets.shape[0] == outputs.shape[0]
    assert targets.shape[-1] == outputs.shape[-1]
    bs, n, d = targets.shape
    m = outputs.shape[1]
    tb, nblk = _choose_tiling(bs, n, m, d)
    return _l1_cdist_native_impl(targets, outputs, tb, nblk)


# ----------------------------------------------------------------------------
# Host-side linear sum assignment (scipy if available, else numpy JV algorithm)
# ----------------------------------------------------------------------------
def _lsa_numpy(cost):
    """Rectangular LSA via Jonker–Volgenant shortest augmenting path.

    Returns (row_ind, col_ind) sorted by row_ind (scipy convention).
    """
    cost = np.asarray(cost, dtype=np.float64)
    transposed = False
    if cost.shape[0] > cost.shape[1]:
        cost = cost.T
        transposed = True
    n, m = cost.shape
    u = np.zeros(n + 1)
    v = np.zeros(m + 1)
    p = np.zeros(m + 1, dtype=np.int64)     # p[j]: row matched to column j (1-indexed)
    way = np.zeros(m + 1, dtype=np.int64)
    for i in range(1, n + 1):
        p[0] = i
        j0 = 0
        minv = np.full(m + 1, np.inf)
        used = np.zeros(m + 1, dtype=bool)
        while True:
            used[j0] = True
            i0 = p[j0]
            delta = np.inf
            j1 = 0
            for j in range(1, m + 1):
                if not used[j]:
                    cur = cost[i0 - 1, j - 1] - u[i0] - v[j]
                    if cur < minv[j]:
                        minv[j] = cur
                        way[j] = j0
                    if minv[j] < delta:
                        delta = minv[j]
                        j1 = j
            for j in range(m + 1):
                if used[j]:
                    u[p[j]] += delta
                    v[j] -= delta
                else:
                    minv[j] -= delta
            j0 = j1
            if p[j0] == 0:
                break
        while True:
            j1 = way[j0]
            p[j0] = p[j1]
            j0 = j1
            if j0 == 0:
                break
    col_of_row = np.full(n, -1, dtype=np.int64)
    for j in range(1, m + 1):
        if p[j] != 0:
            col_of_row[p[j] - 1] = j - 1
    rows = np.arange(n, dtype=np.int64)
    if transposed:
        # solved on cost.T: its rows are the original columns (and vice versa)
        order = np.argsort(col_of_row)
        return col_of_row[order], rows[order]
    return rows, col_of_row


def _linear_sum_assignment(cost):
    if _scipy_lsa is not None:
        r, c = _scipy_lsa(cost)
        return np.asarray(r, dtype=np.int64), np.asarray(c, dtype=np.int64)
    return _lsa_numpy(cost)


# ----------------------------------------------------------------------------
# HungarianMatcher: same forward semantics as the PyTorch module
# ----------------------------------------------------------------------------
class HungarianMatcher:
    """Solve assignment problem (JAX/Pallas version)."""

    def __call__(self, outputs, targets):
        assert outputs.shape[-1] == targets.shape[-1]

        if outputs.ndim == 3:
            bs = outputs.shape[0]
            C_native = _l1_cdist_native(targets, outputs)          # (m, n, bs_pad)
        else:
            bs = 1
            C_native = _l1_cdist_native(targets[None], outputs[None])

        # TODO(synk): linear_sum_assignment is a sequential combinatorial solve with
        # no clean Pallas equivalent; it runs on the host (forces device->host sync).
        C_host = np.asarray(jax.block_until_ready(C_native))       # f32, native layout

        def solve(b):
            # per-batch transpose + f64 cast is tiny (n x m); padded batches (b >= bs)
            # never reach the solver.
            return _linear_sum_assignment(C_host[:, :, b].T.astype(np.float64))

        if _scipy_lsa is not None and bs > 4:
            # independent per-batch solves; scipy's C solver can run off the Python loop
            with ThreadPoolExecutor(max_workers=min(16, bs)) as ex:
                indices = list(ex.map(solve, range(bs)))
        else:
            indices = [solve(b) for b in range(bs)]

        # PyTorch module returns [(j, i)] i.e. (output_indices, target_indices).
        return [
            (jnp.asarray(j, dtype=jnp.int32), jnp.asarray(i, dtype=jnp.int32))
            for i, j in indices
        ]


# ----------------------------------------------------------------------------
if __name__ == "__main__":
    key = jax.random.PRNGKey(0)
    k_out, k_tgt, k_out2, k_tgt2 = jax.random.split(key, 4)

    # Shapes consistent with the module's usage: (batch, n_queries, feature).
    bs, n_queries, feat = 2, 8, 4
    outputs = jax.random.normal(k_out, (bs, n_queries, feat), dtype=jnp.float32)
    targets = jax.random.normal(k_tgt, (bs, n_queries, feat), dtype=jnp.float32)

    # 1) Pallas cost-matrix kernel vs. pure-JAX reference (tiny batch, 1 grid step).
    #    The kernel returns its native (m, n, bs_pad) layout; transpose on host.
    C_nat = jax.block_until_ready(_l1_cdist_native(targets, outputs))
    C = np.transpose(np.asarray(C_nat), (2, 1, 0))[:bs]
    C_ref = np.asarray(
        jnp.sum(jnp.abs(targets[:, :, None, :] - outputs[:, None, :, :]), axis=-1))
    np.testing.assert_allclose(C, C_ref, rtol=1e-5, atol=1e-5)

    # 2) Larger batch: exercises the batch-folded path with lane padding.
    bs_big = 300
    outputs_big = jax.random.normal(k_out2, (bs_big, n_queries, feat), dtype=jnp.float32)
    targets_big = jax.random.normal(k_tgt2, (bs_big, n_queries, feat), dtype=jnp.float32)
    C_big_nat = jax.block_until_ready(_l1_cdist_native(targets_big, outputs_big))
    C_big = np.transpose(np.asarray(C_big_nat), (2, 1, 0))[:bs_big]
    C_big_ref = np.asarray(jnp.sum(
        jnp.abs(targets_big[:, :, None, :] - outputs_big[:, None, :, :]), axis=-1))
    np.testing.assert_allclose(C_big, C_big_ref, rtol=1e-5, atol=1e-5)

    # 3) Host assignment sanity check: optimal cost matches brute force on a small case.
    rng = np.random.RandomState(0)
    small = rng.rand(6, 6)
    r_idx, c_idx = _linear_sum_assignment(small)
    best = min(sum(small[i, p[i]] for i in range(6))
               for p in itertools.permutations(range(6)))
    assert abs(small[r_idx, c_idx].sum() - best) < 1e-9

    # 4) Full matcher forward (same return convention as the PyTorch module).
    matcher = HungarianMatcher()
    result = matcher(outputs, targets)
    assert len(result) == bs
    for j_idx, i_idx in result:
        jax.block_until_ready(j_idx)
        jax.block_until_ready(i_idx)

    # Matcher output must correspond to the optimal assignment of the f32 cost.
    for b, (j_idx, i_idx) in enumerate(result):
        r_ref, c_ref_idx = _linear_sum_assignment(np.asarray(C[b], dtype=np.float64))
        assert abs(C[b][np.asarray(i_idx), np.asarray(j_idx)].sum()
                   - C[b][r_ref, c_ref_idx].sum()) < 1e-5

    print("KERNEL_OK")
</pallas_src>

<mosaic_0001>
module attributes {stable_mosaic.version = 11 : i64} {
  func.func @_l1_cdist_kernel(%arg0: i32, %arg1: memref<4x16x128xf32, #tpu.memory_space<vmem>>, %arg2: memref<8x8x128xf32, #tpu.memory_space<vmem>>) attributes {dimension_semantics = [#tpu.dimension_semantics<parallel>], iteration_bounds = array<i64: 1>, scalar_prefetch = 0 : i64, scratch_operands = 0 : i64, tpu.core_type = #tpu.core_type<tc>, window_params = [{transform_indices = @transform_0, window_bounds = array<i64: 4, 16, 128>}, {transform_indices = @transform_1, window_bounds = array<i64: 8, 8, 128>}]} {
    %c0 = arith.constant 0 : index
    %c0_0 = arith.constant 0 : index
    %c0_1 = arith.constant 0 : index
    %0 = vector.load %arg1[%c0, %c0_0, %c0_1] : memref<4x16x128xf32, #tpu.memory_space<vmem>>, vector<1x8x128xf32>
    %1 = vector.shape_cast %0 : vector<1x8x128xf32> to vector<8x128xf32>
    %c0_2 = arith.constant 0 : index
    %c8 = arith.constant 8 : index
    %c0_3 = arith.constant 0 : index
    %2 = vector.load %arg1[%c0_2, %c8, %c0_3] : memref<4x16x128xf32, #tpu.memory_space<vmem>>, vector<1x1x128xf32>
    %3 = vector.shape_cast %2 : vector<1x1x128xf32> to vector<1x128xf32>
    %4 = vector.broadcast %3 : vector<1x128xf32> to vector<8x128xf32>
    %5 = arith.subf %1, %4 : vector<8x128xf32>
    %6 = math.absf %5 : vector<8x128xf32>
    %c1 = arith.constant 1 : index
    %c0_4 = arith.constant 0 : index
    %c0_5 = arith.constant 0 : index
    %7 = vector.load %arg1[%c1, %c0_4, %c0_5] : memref<4x16x128xf32, #tpu.memory_space<vmem>>, vector<1x8x128xf32>
    %8 = vector.shape_cast %7 : vector<1x8x128xf32> to vector<8x128xf32>
    %c1_6 = arith.constant 1 : index
    %c8_7 = arith.constant 8 : index
    %c0_8 = arith.constant 0 : index
    %9 = vector.load %arg1[%c1_6, %c8_7, %c0_8] : memref<4x16x128xf32, #tpu.memory_space<vmem>>, vector<1x1x128xf32>
    %10 = vector.shape_cast %9 : vector<1x1x128xf32> to vector<1x128xf32>
    %11 = vector.broadcast %10 : vector<1x128xf32> to vector<8x128xf32>
    %12 = arith.subf %8, %11 : vector<8x128xf32>
    %13 = math.absf %12 : vector<8x128xf32>
    %14 = arith.addf %6, %13 : vector<8x128xf32>
    %c2 = arith.constant 2 : index
    %c0_9 = arith.constant 0 : index
    %c0_10 = arith.constant 0 : index
    %15 = vector.load %arg1[%c2, %c0_9, %c0_10] : memref<4x16x128xf32, #tpu.memory_space<vmem>>, vector<1x8x128xf32>
    %16 = vector.shape_cast %15 : vector<1x8x128xf32> to vector<8x128xf32>
    %c2_11 = arith.constant 2 : index
    %c8_12 = arith.constant 8 : index
    %c0_13 = arith.constant 0 : index
    %17 = vector.load %arg1[%c2_11, %c8_12, %c0_13] : memref<4x16x128xf32, #tpu.memory_space<vmem>>, vector<1x1x128xf32>
    %18 = vector.shape_cast %17 : vector<1x1x128xf32> to vector<1x128xf32>
    %19 = vector.broadcast %18 : vector<1x128xf32> to vector<8x128xf32>
    %20 = arith.subf %16, %19 : vector<8x128xf32>
    %21 = math.absf %20 : vector<8x128xf32>
    %22 = arith.addf %14, %21 : vector<8x128xf32>
    %c3 = arith.constant 3 : index
    %c0_14 = arith.constant 0 : index
    %c0_15 = arith.constant 0 : index
    %23 = vector.load %arg1[%c3, %c0_14, %c0_15] : memref<4x16x128xf32, #tpu.memory_space<vmem>>, vector<1x8x128xf32>
    %24 = vector.shape_cast %23 : vector<1x8x128xf32> to vector<8x128xf32>
    %c3_16 = arith.constant 3 : index
    %c8_17 = arith.constant 8 : index
    %c0_18 = arith.constant 0 : index
    %25 = vector.load %arg1[%c3_16, %c8_17, %c0_18] : memref<4x16x128xf32, #tpu.memory_space<vmem>>, vector<1x1x128xf32>
    %26 = vector.shape_cast %25 : vector<1x1x128xf32> to vector<1x128xf32>
    %27 = vector.broadcast %26 : vector<1x128xf32> to vector<8x128xf32>
    %28 = arith.subf %24, %27 : vector<8x128xf32>
    %29 = math.absf %28 : vector<8x128xf32>
    %30 = arith.addf %22, %29 : vector<8x128xf32>
    %c0_19 = arith.constant 0 : index
    %c0_20 = arith.constant 0 : index
    %c0_21 = arith.constant 0 : index
    %31 = vector.load %arg2[%c0_19, %c0_20, %c0_21] : memref<8x8x128xf32, #tpu.memory_space<vmem>>, vector<1x8x128xf32>
    %32 = vector.shape_cast %31 : vector<1x8x128xf32> to vector<8x128xf32>
    %33 = vector.shape_cast %30 : vector<8x128xf32> to vector<1x8x128xf32>
    tpu.vector_store %arg2[%c0_19, %c0_20, %c0_21], %33 {strides = array<i32>} : memref<8x8x128xf32, #tpu.memory_space<vmem>>, vector<1x8x128xf32>,
    %c0_22 = arith.constant 0 : index
    %c0_23 = arith.constant 0 : index
    %c0_24 = arith.constant 0 : index
    %34 = vector.load %arg1[%c0_22, %c0_23, %c0_24] : memref<4x16x128xf32, #tpu.memory_space<vmem>>, vector<1x8x128xf32>
    %35 = vector.shape_cast %34 : vector<1x8x128xf32> to vector<8x128xf32>
    %c0_25 = arith.constant 0 : index
    %c9 = arith.constant 9 : index
    %c0_26 = arith.constant 0 : index
    %36 = vector.load %arg1[%c0_25, %c9, %c0_26] : memref<4x16x128xf32, #tpu.memory_space<vmem>>, vector<1x1x128xf32>
    %37 = vector.shape_cast %36 : vector<1x1x128xf32> to vector<1x128xf32>
    %38 = vector.broadcast %37 : vector<1x128xf32> to vector<8x128xf32>
    %39 = arith.subf %35, %38 : vector<8x128xf32>
    %40 = math.absf %39 : vector<8x128xf32>
    %c1_27 = arith.constant 1 : index
    %c0_28 = arith.constant 0 : index
    %c0_29 = arith.constant 0 : index
    %41 = vector.load %arg1[%c1_27, %c0_28, %c0_29] : memref<4x16x128xf32, #tpu.memory_space<vmem>>, vector<1x8x128xf32>
    %42 = vector.shape_cast %41 : vector<1x8x128xf32> to vector<8x128xf32>
    %c1_30 = arith.constant 1 : index
    %c9_31 = arith.constant 9 : index
    %c0_32 = arith.constant 0 : index
    %43 = vector.load %arg1[%c1_30, %c9_31, %c0_32] : memref<4x16x128xf32, #tpu.memory_space<vmem>>, vector<1x1x128xf32>
    %44 = vector.shape_cast %43 : vector<1x1x128xf32> to vector<1x128xf32>
    %45 = vector.broadcast %44 : vector<1x128xf32> to vector<8x128xf32>
    %46 = arith.subf %42, %45 : vector<8x128xf32>
    %47 = math.absf %46 : vector<8x128xf32>
    %48 = arith.addf %40, %47 : vector<8x128xf32>
    %c2_33 = arith.constant 2 : index
    %c0_34 = arith.constant 0 : index
    %c0_35 = arith.constant 0 : index
    %49 = vector.load %arg1[%c2_33, %c0_34, %c0_35] : memref<4x16x128xf32, #tpu.memory_space<vmem>>, vector<1x8x128xf32>
    %50 = vector.shape_cast %49 : vector<1x8x128xf32> to vector<8x128xf32>
    %c2_36 = arith.constant 2 : index
    %c9_37 = arith.constant 9 : index
    %c0_38 = arith.constant 0 : index
    %51 = vector.load %arg1[%c2_36, %c9_37, %c0_38] : memref<4x16x128xf32, #tpu.memory_space<vmem>>, vector<1x1x128xf32>
    %52 = vector.shape_cast %51 : vector<1x1x128xf32> to vector<1x128xf32>
    %53 = vector.broadcast %52 : vector<1x128xf32> to vector<8x128xf32>
    %54 = arith.subf %50, %53 : vector<8x128xf32>
    %55 = math.absf %54 : vector<8x128xf32>
    %56 = arith.addf %48, %55 : vector<8x128xf32>
    %c3_39 = arith.constant 3 : index
    %c0_40 = arith.constant 0 : index
    %c0_41 = arith.constant 0 : index
    %57 = vector.load %arg1[%c3_39, %c0_40, %c0_41] : memref<4x16x128xf32, #tpu.memory_space<vmem>>, vector<1x8x128xf32>
    %58 = vector.shape_cast %57 : vector<1x8x128xf32> to vector<8x128xf32>
    %c3_42 = arith.constant 3 : index
    %c9_43 = arith.constant 9 : index
    %c0_44 = arith.constant 0 : index
    %59 = vector.load %arg1[%c3_42, %c9_43, %c0_44] : memref<4x16x128xf32, #tpu.memory_space<vmem>>, vector<1x1x128xf32>
    %60 = vector.shape_cast %59 : vector<1x1x128xf32> to vector<1x128xf32>
    %61 = vector.broadcast %60 : vector<1x128xf32> to vector<8x128xf32>
    %62 = arith.subf %58, %61 : vector<8x128xf32>
    %63 = math.absf %62 : vector<8x128xf32>
    %64 = arith.addf %56, %63 : vector<8x128xf32>
    %c1_45 = arith.constant 1 : index
    %c0_46 = arith.constant 0 : index
    %c0_47 = arith.constant 0 : index
    %65 = vector.load %arg2[%c1_45, %c0_46, %c0_47] : memref<8x8x128xf32, #tpu.memory_space<vmem>>, vector<1x8x128xf32>
    %66 = vector.shape_cast %65 : vector<1x8x128xf32> to vector<8x128xf32>
    %67 = vector.shape_cast %64 : vector<8x128xf32> to vector<1x8x128xf32>
    tpu.vector_store %arg2[%c1_45, %c0_46, %c0_47], %67 {strides = array<i32>} : memref<8x8x128xf32, #tpu.memory_space<vmem>>, vector<1x8x128xf32>,
    %c0_48 = arith.constant 0 : index
    %c0_49 = arith.constant 0 : index
    %c0_50 = arith.constant 0 : index
    %68 = vector.load %arg1[%c0_48, %c0_49, %c0_50] : memref<4x16x128xf32, #tpu.memory_space<vmem>>, vector<1x8x128xf32>
    %69 = vector.shape_cast %68 : vector<1x8x128xf32> to vector<8x128xf32>
    %c0_51 = arith.constant 0 : index
    %c10 = arith.constant 10 : index
    %c0_52 = arith.constant 0 : index
    %70 = vector.load %arg1[%c0_51, %c10, %c0_52] : memref<4x16x128xf32, #tpu.memory_space<vmem>>, vector<1x1x128xf32>
    %71 = vector.shape_cast %70 : vector<1x1x128xf32> to vector<1x128xf32>
    %72 = vector.broadcast %71 : vector<1x128xf32> to vector<8x128xf32>
    %73 = arith.subf %69, %72 : vector<8x128xf32>
    %74 = math.absf %73 : vector<8x128xf32>
    %c1_53 = arith.constant 1 : index
    %c0_54 = arith.constant 0 : index
    %c0_55 = arith.constant 0 : index
    %75 = vector.load %arg1[%c1_53, %c0_54, %c0_55] : memref<4x16x128xf32, #tpu.memory_space<vmem>>, vector<1x8x128xf32>
    %76 = vector.shape_cast %75 : vector<1x8x128xf32> to vector<8x128xf32>
    %c1_56 = arith.constant 1 : index
    %c10_57 = arith.constant 10 : index
    %c0_58 = arith.constant 0 : index
    %77 = vector.load %arg1[%c1_56, %c10_57, %c0_58] : memref<4x16x128xf32, #tpu.memory_space<vmem>>, vector<1x1x128xf32>
    %78 = vector.shape_cast %77 : vector<1x1x128xf32> to vector<1x128xf32>
    %79 = vector.broadcast %78 : vector<1x128xf32> to vector<8x128xf32>
    %80 = arith.subf %76, %79 : vector<8x128xf32>
    %81 = math.absf %80 : vector<8x128xf32>
    %82 = arith.addf %74, %81 : vector<8x128xf32>
    %c2_59 = arith.constant 2 : index
    %c0_60 = arith.constant 0 : index
    %c0_61 = arith.constant 0 : index
    %83 = vector.load %arg1[%c2_59, %c0_60, %c0_61] : memref<4x16x128xf32, #tpu.memory_space<vmem>>, vector<1x8x128xf32>
    %84 = vector.shape_cast %83 : vector<1x8x128xf32> to vector<8x128xf32>
    %c2_62 = arith.constant 2 : index
    %c10_63 = arith.constant 10 : index
    %c0_64 = arith.constant 0 : index
    %85 = vector.load %arg1[%c2_62, %c10_63, %c0_64] : memref<4x16x128xf32, #tpu.memory_space<vmem>>, vector<1x1x128xf32>
    %86 = vector.shape_cast %85 : vector<1x1x128xf32> to vector<1x128xf32>
    %87 = vector.broadcast %86 : vector<1x128xf32> to vector<8x128xf32>
    %88 = arith.subf %84, %87 : vector<8x128xf32>
    %89 = math.absf %88 : vector<8x128xf32>
    %90 = arith.addf %82, %89 : vector<8x128xf32>
    %c3_65 = arith.constant 3 : index
    %c0_66 = arith.constant 0 : index
    %c0_67 = arith.constant 0 : index
    %91 = vector.load %arg1[%c3_65, %c0_66, %c0_67] : memref<4x16x128xf32, #tpu.memory_space<vmem>>, vector<1x8x128xf32>
    %92 = vector.shape_cast %91 : vector<1x8x128xf32> to vector<8x128xf32>
    %c3_68 = arith.constant 3 : index
    %c10_69 = arith.constant 10 : index
    %c0_70 = arith.constant 0 : index
    %93 = vector.load %arg1[%c3_68, %c10_69, %c0_70] : memref<4x16x128xf32, #tpu.memory_space<vmem>>, vector<1x1x128xf32>
    %94 = vector.shape_cast %93 : vector<1x1x128xf32> to vector<1x128xf32>
    %95 = vector.broadcast %94 : vector<1x128xf32> to vector<8x128xf32>
    %96 = arith.subf %92, %95 : vector<8x128xf32>
    %97 = math.absf %96 : vector<8x128xf32>
    %98 = arith.addf %90, %97 : vector<8x128xf32>
    %c2_71 = arith.constant 2 : index
    %c0_72 = arith.constant 0 : index
    %c0_73 = arith.constant 0 : index
    %99 = vector.load %arg2[%c2_71, %c0_72, %c0_73] : memref<8x8x128xf32, #tpu.memory_space<vmem>>, vector<1x8x128xf32>
    %100 = vector.shape_cast %99 : vector<1x8x128xf32> to vector<8x128xf32>
    %101 = vector.shape_cast %98 : vector<8x128xf32> to vector<1x8x128xf32>
    tpu.vector_store %arg2[%c2_71, %c0_72, %c0_73], %101 {strides = array<i32>} : memref<8x8x128xf32, #tpu.memory_space<vmem>>, vector<1x8x128xf32>,
    %c0_74 = arith.constant 0 : index
    %c0_75 = arith.constant 0 : index
    %c0_76 = arith.constant 0 : index
    %102 = vector.load %arg1[%c0_74, %c0_75, %c0_76] : memref<4x16x128xf32, #tpu.memory_space<vmem>>, vector<1x8x128xf32>
    %103 = vector.shape_cast %102 : vector<1x8x128xf32> to vector<8x128xf32>
    %c0_77 = arith.constant 0 : index
    %c11 = arith.constant 11 : index
    %c0_78 = arith.constant 0 : index
    %104 = vector.load %arg1[%c0_77, %c11, %c0_78] : memref<4x16x128xf32, #tpu.memory_space<vmem>>, vector<1x1x128xf32>
    %105 = vector.shape_cast %104 : vector<1x1x128xf32> to vector<1x128xf32>
    %106 = vector.broadcast %105 : vector<1x128xf32> to vector<8x128xf32>
    %107 = arith.subf %103, %106 : vector<8x128xf32>
    %108 = math.absf %107 : vector<8x128xf32>
    %c1_79 = arith.constant 1 : index
    %c0_80 = arith.constant 0 : index
    %c0_81 = arith.constant 0 : index
    %109 = vector.load %arg1[%c1_79, %c0_80, %c0_81] : memref<4x16x128xf32, #tpu.memory_space<vmem>>, vector<1x8x128xf32>
    %110 = vector.shape_cast %109 : vector<1x8x128xf32> to vector<8x128xf32>
    %c1_82 = arith.constant 1 : index
    %c11_83 = arith.constant 11 : index
    %c0_84 = arith.constant 0 : index
    %111 = vector.load %arg1[%c1_82, %c11_83, %c0_84] : memref<4x16x128xf32, #tpu.memory_space<vmem>>, vector<1x1x128xf32>
    %112 = vector.shape_cast %111 : vector<1x1x128xf32> to vector<1x128xf32>
    %113 = vector.broadcast %112 : vector<1x128xf32> to vector<8x128xf32>
    %114 = arith.subf %110, %113 : vector<8x128xf32>
    %115 = math.absf %114 : vector<8x128xf32>
    %116 = arith.addf %108, %115 : vector<8x128xf32>
    %c2_85 = arith.constant 2 : index
    %c0_86 = arith.constant 0 : index
    %c0_87 = arith.constant 0 : index
    %117 = vector.load %arg1[%c2_85, %c0_86, %c0_87] : memref<4x16x128xf32, #tpu.memory_space<vmem>>, vector<1x8x128xf32>
    %118 = vector.shape_cast %117 : vector<1x8x128xf32> to vector<8x128xf32>
    %c2_88 = arith.constant 2 : index
    %c11_89 = arith.constant 11 : index
    %c0_90 = arith.constant 0 : index
    %119 = vector.load %arg1[%c2_88, %c11_89, %c0_90] : memref<4x16x128xf32, #tpu.memory_space<vmem>>, vector<1x1x128xf32>
    %120 = vector.shape_cast %119 : vector<1x1x128xf32> to vector<1x128xf32>
    %121 = vector.broadcast %120 : vector<1x128xf32> to vector<8x128xf32>
    %122 = arith.subf %118, %121 : vector<8x128xf32>
    %123 = math.absf %122 : vector<8x128xf32>
    %124 = arith.addf %116, %123 : vector<8x128xf32>
    %c3_91 = arith.constant 3 : index
    %c0_92 = arith.constant 0 : index
    %c0_93 = arith.constant 0 : index
    %125 = vector.load %arg1[%c3_91, %c0_92, %c0_93] : memref<4x16x128xf32, #tpu.memory_space<vmem>>, vector<1x8x128xf32>
    %126 = vector.shape_cast %125 : vector<1x8x128xf32> to vector<8x128xf32>
    %c3_94 = arith.constant 3 : index
    %c11_95 = arith.constant 11 : index
    %c0_96 = arith.constant 0 : index
    %127 = vector.load %arg1[%c3_94, %c11_95, %c0_96] : memref<4x16x128xf32, #tpu.memory_space<vmem>>, vector<1x1x128xf32>
    %128 = vector.shape_cast %127 : vector<1x1x128xf32> to vector<1x128xf32>
    %129 = vector.broadcast %128 : vector<1x128xf32> to vector<8x128xf32>
    %130 = arith.subf %126, %129 : vector<8x128xf32>
    %131 = math.absf %130 : vector<8x128xf32>
    %132 = arith.addf %124, %131 : vector<8x128xf32>
    %c3_97 = arith.constant 3 : index
    %c0_98 = arith.constant 0 : index
    %c0_99 = arith.constant 0 : index
    %133 = vector.load %arg2[%c3_97, %c0_98, %c0_99] : memref<8x8x128xf32, #tpu.memory_space<vmem>>, vector<1x8x128xf32>
    %134 = vector.shape_cast %133 : vector<1x8x128xf32> to vector<8x128xf32>
    %135 = vector.shape_cast %132 : vector<8x128xf32> to vector<1x8x128xf32>
    tpu.vector_store %arg2[%c3_97, %c0_98, %c0_99], %135 {strides = array<i32>} : memref<8x8x128xf32, #tpu.memory_space<vmem>>, vector<1x8x128xf32>,
    %c0_100 = arith.constant 0 : index
    %c0_101 = arith.constant 0 : index
    %c0_102 = arith.constant 0 : index
    %136 = vector.load %arg1[%c0_100, %c0_101, %c0_102] : memref<4x16x128xf32, #tpu.memory_space<vmem>>, vector<1x8x128xf32>
    %137 = vector.shape_cast %136 : vector<1x8x128xf32> to vector<8x128xf32>
    %c0_103 = arith.constant 0 : index
    %c12 = arith.constant 12 : index
    %c0_104 = arith.constant 0 : index
    %138 = vector.load %arg1[%c0_103, %c12, %c0_104] : memref<4x16x128xf32, #tpu.memory_space<vmem>>, vector<1x1x128xf32>
    %139 = vector.shape_cast %138 : vector<1x1x128xf32> to vector<1x128xf32>
    %140 = vector.broadcast %139 : vector<1x128xf32> to vector<8x128xf32>
    %141 = arith.subf %137, %140 : vector<8x128xf32>
    %142 = math.absf %141 : vector<8x128xf32>
    %c1_105 = arith.constant 1 : index
    %c0_106 = arith.constant 0 : index
    %c0_107 = arith.constant 0 : index
    %143 = vector.load %arg1[%c1_105, %c0_106, %c0_107] : memref<4x16x128xf32, #tpu.memory_space<vmem>>, vector<1x8x128xf32>
    %144 = vector.shape_cast %143 : vector<1x8x128xf32> to vector<8x128xf32>
    %c1_108 = arith.constant 1 : index
    %c12_109 = arith.constant 12 : index
    %c0_110 = arith.constant 0 : index
    %145 = vector.load %arg1[%c1_108, %c12_109, %c0_110] : memref<4x16x128xf32, #tpu.memory_space<vmem>>, vector<1x1x128xf32>
    %146 = vector.shape_cast %145 : vector<1x1x128xf32> to vector<1x128xf32>
    %147 = vector.broadcast %146 : vector<1x128xf32> to vector<8x128xf32>
    %148 = arith.subf %144, %147 : vector<8x128xf32>
    %149 = math.absf %148 : vector<8x128xf32>
    %150 = arith.addf %142, %149 : vector<8x128xf32>
    %c2_111 = arith.constant 2 : index
    %c0_112 = arith.constant 0 : index
    %c0_113 = arith.constant 0 : index
    %151 = vector.load %arg1[%c2_111, %c0_112, %c0_113] : memref<4x16x128xf32, #tpu.memory_space<vmem>>, vector<1x8x128xf32>
    %152 = vector.shape_cast %151 : vector<1x8x128xf32> to vector<8x128xf32>
    %c2_114 = arith.constant 2 : index
    %c12_115 = arith.constant 12 : index
    %c0_116 = arith.constant 0 : index
    %153 = vector.load %arg1[%c2_114, %c12_115, %c0_116] : memref<4x16x128xf32, #tpu.memory_space<vmem>>, vector<1x1x128xf32>
    %154 = vector.shape_cast %153 : vector<1x1x128xf32> to vector<1x128xf32>
    %155 = vector.broadcast %154 : vector<1x128xf32> to vector<8x128xf32>
    %156 = arith.subf %152, %155 : vector<8x128xf32>
    %157 = math.absf %156 : vector<8x128xf32>
    %158 = arith.addf %150, %157 : vector<8x128xf32>
    %c3_117 = arith.constant 3 : index
    %c0_118 = arith.constant 0 : index
    %c0_119 = arith.constant 0 : index
    %159 = vector.load %arg1[%c3_117, %c0_118, %c0_119] : memref<4x16x128xf32, #tpu.memory_space<vmem>>, vector<1x8x128xf32>
    %160 = vector.shape_cast %159 : vector<1x8x128xf32> to vector<8x128xf32>
    %c3_120 = arith.constant 3 : index
    %c12_121 = arith.constant 12 : index
    %c0_122 = arith.constant 0 : index
    %161 = vector.load %arg1[%c3_120, %c12_121, %c0_122] : memref<4x16x128xf32, #tpu.memory_space<vmem>>, vector<1x1x128xf32>
    %162 = vector.shape_cast %161 : vector<1x1x128xf32> to vector<1x128xf32>
    %163 = vector.broadcast %162 : vector<1x128xf32> to vector<8x128xf32>
    %164 = arith.subf %160, %163 : vector<8x128xf32>
    %165 = math.absf %164 : vector<8x128xf32>
    %166 = arith.addf %158, %165 : vector<8x128xf32>
    %c4 = arith.constant 4 : index
    %c0_123 = arith.constant 0 : index
    %c0_124 = arith.constant 0 : index
    %167 = vector.load %arg2[%c4, %c0_123, %c0_124] : memref<8x8x128xf32, #tpu.memory_space<vmem>>, vector<1x8x128xf32>
    %168 = vector.shape_cast %167 : vector<1x8x128xf32> to vector<8x128xf32>
    %169 = vector.shape_cast %166 : vector<8x128xf32> to vector<1x8x128xf32>
    tpu.vector_store %arg2[%c4, %c0_123, %c0_124], %169 {strides = array<i32>} : memref<8x8x128xf32, #tpu.memory_space<vmem>>, vector<1x8x128xf32>,
    %c0_125 = arith.constant 0 : index
    %c0_126 = arith.constant 0 : index
    %c0_127 = arith.constant 0 : index
    %170 = vector.load %arg1[%c0_125, %c0_126, %c0_127] : memref<4x16x128xf32, #tpu.memory_space<vmem>>, vector<1x8x128xf32>
    %171 = vector.shape_cast %170 : vector<1x8x128xf32> to vector<8x128xf32>
    %c0_128 = arith.constant 0 : index
    %c13 = arith.constant 13 : index
    %c0_129 = arith.constant 0 : index
    %172 = vector.load %arg1[%c0_128, %c13, %c0_129] : memref<4x16x128xf32, #tpu.memory_space<vmem>>, vector<1x1x128xf32>
    %173 = vector.shape_cast %172 : vector<1x1x128xf32> to vector<1x128xf32>
    %174 = vector.broadcast %173 : vector<1x128xf32> to vector<8x128xf32>
    %175 = arith.subf %171, %174 : vector<8x128xf32>
    %176 = math.absf %175 : vector<8x128xf32>
    %c1_130 = arith.constant 1 : index
    %c0_131 = arith.constant 0 : index
    %c0_132 = arith.constant 0 : index
    %177 = vector.load %arg1[%c1_130, %c0_131, %c0_132] : memref<4x16x128xf32, #tpu.memory_space<vmem>>, vector<1x8x128xf32>
    %178 = vector.shape_cast %177 : vector<1x8x128xf32> to vector<8x128xf32>
    %c1_133 = arith.constant 1 : index
    %c13_134 = arith.constant 13 : index
    %c0_135 = arith.constant 0 : index
    %179 = vector.load %arg1[%c1_133, %c13_134, %c0_135] : memref<4x16x128xf32, #tpu.memory_space<vmem>>, vector<1x1x128xf32>
    %180 = vector.shape_cast %179 : vector<1x1x128xf32> to vector<1x128xf32>
    %181 = vector.broadcast %180 : vector<1x128xf32> to vector<8x128xf32>
    %182 = arith.subf %178, %181 : vector<8x128xf32>
    %183 = math.absf %182 : vector<8x128xf32>
    %184 = arith.addf %176, %183 : vector<8x128xf32>
    %c2_136 = arith.constant 2 : index
    %c0_137 = arith.constant 0 : index
    %c0_138 = arith.constant 0 : index
    %185 = vector.load %arg1[%c2_136, %c0_137, %c0_138] : memref<4x16x128xf32, #tpu.memory_space<vmem>>, vector<1x8x128xf32>
    %186 = vector.shape_cast %185 : vector<1x8x128xf32> to vector<8x128xf32>
    %c2_139 = arith.constant 2 : index
    %c13_140 = arith.constant 13 : index
    %c0_141 = arith.constant 0 : index
    %187 = vector.load %arg1[%c2_139, %c13_140, %c0_141] : memref<4x16x128xf32, #tpu.memory_space<vmem>>, vector<1x1x128xf32>
    %188 = vector.shape_cast %187 : vector<1x1x128xf32> to vector<1x128xf32>
    %189 = vector.broadcast %188 : vector<1x128xf32> to vector<8x128xf32>
    %190 = arith.subf %186, %189 : vector<8x128xf32>
    %191 = math.absf %190 : vector<8x128xf32>
    %192 = arith.addf %184, %191 : vector<8x128xf32>
    %c3_142 = arith.constant 3 : index
    %c0_143 = arith.constant 0 : index
    %c0_144 = arith.constant 0 : index
    %193 = vector.load %arg1[%c3_142, %c0_143, %c0_144] : memref<4x16x128xf32, #tpu.memory_space<vmem>>, vector<1x8x128xf32>
    %194 = vector.shape_cast %193 : vector<1x8x128xf32> to vector<8x128xf32>
    %c3_145 = arith.constant 3 : index
    %c13_146 = arith.constant 13 : index
    %c0_147 = arith.constant 0 : index
    %195 = vector.load %arg1[%c3_145, %c13_146, %c0_147] : memref<4x16x128xf32, #tpu.memory_space<vmem>>, vector<1x1x128xf32>
    %196 = vector.shape_cast %195 : vector<1x1x128xf32> to vector<1x128xf32>
    %197 = vector.broadcast %196 : vector<1x128xf32> to vector<8x128xf32>
    %198 = arith.subf %194, %197 : vector<8x128xf32>
    %199 = math.absf %198 : vector<8x128xf32>
    %200 = arith.addf %192, %199 : vector<8x128xf32>
    %c5 = arith.constant 5 : index
    %c0_148 = arith.constant 0 : index
    %c0_149 = arith.constant 0 : index
    %201 = vector.load %arg2[%c5, %c0_148, %c0_149] : memref<8x8x128xf32, #tpu.memory_space<vmem>>, vector<1x8x128xf32>
    %202 = vector.shape_cast %201 : vector<1x8x128xf32> to vector<8x128xf32>
    %203 = vector.shape_cast %200 : vector<8x128xf32> to vector<1x8x128xf32>
    tpu.vector_store %arg2[%c5, %c0_148, %c0_149], %203 {strides = array<i32>} : memref<8x8x128xf32, #tpu.memory_space<vmem>>, vector<1x8x128xf32>,
    %c0_150 = arith.constant 0 : index
    %c0_151 = arith.constant 0 : index
    %c0_152 = arith.constant 0 : index
    %204 = vector.load %arg1[%c0_150, %c0_151, %c0_152] : memref<4x16x128xf32, #tpu.memory_space<vmem>>, vector<1x8x128xf32>
    %205 = vector.shape_cast %204 : vector<1x8x128xf32> to vector<8x128xf32>
    %c0_153 = arith.constant 0 : index
    %c14 = arith.constant 14 : index
    %c0_154 = arith.constant 0 : index
    %206 = vector.load %arg1[%c0_153, %c14, %c0_154] : memref<4x16x128xf32, #tpu.memory_space<vmem>>, vector<1x1x128xf32>
    %207 = vector.shape_cast %206 : vector<1x1x128xf32> to vector<1x128xf32>
    %208 = vector.broadcast %207 : vector<1x128xf32> to vector<8x128xf32>
    %209 = arith.subf %205, %208 : vector<8x128xf32>
    %210 = math.absf %209 : vector<8x128xf32>
    %c1_155 = arith.constant 1 : index
    %c0_156 = arith.constant 0 : index
    %c0_157 = arith.constant 0 : index
    %211 = vector.load %arg1[%c1_155, %c0_156, %c0_157] : memref<4x16x128xf32, #tpu.memory_space<vmem>>, vector<1x8x128xf32>
    %212 = vector.shape_cast %211 : vector<1x8x128xf32> to vector<8x128xf32>
    %c1_158 = arith.constant 1 : index
    %c14_159 = arith.constant 14 : index
    %c0_160 = arith.constant 0 : index
    %213 = vector.load %arg1[%c1_158, %c14_159, %c0_160] : memref<4x16x128xf32, #tpu.memory_space<vmem>>, vector<1x1x128xf32>
    %214 = vector.shape_cast %213 : vector<1x1x128xf32> to vector<1x128xf32>
    %215 = vector.broadcast %214 : vector<1x128xf32> to vector<8x128xf32>
    %216 = arith.subf %212, %215 : vector<8x128xf32>
    %217 = math.absf %216 : vector<8x128xf32>
    %218 = arith.addf %210, %217 : vector<8x128xf32>
    %c2_161 = arith.constant 2 : index
    %c0_162 = arith.constant 0 : index
    %c0_163 = arith.constant 0 : index
    %219 = vector.load %arg1[%c2_161, %c0_162, %c0_163] : memref<4x16x128xf32, #tpu.memory_space<vmem>>, vector<1x8x128xf32>
    %220 = vector.shape_cast %219 : vector<1x8x128xf32> to vector<8x128xf32>
    %c2_164 = arith.constant 2 : index
    %c14_165 = arith.constant 14 : index
    %c0_166 = arith.constant 0 : index
    %221 = vector.load %arg1[%c2_164, %c14_165, %c0_166] : memref<4x16x128xf32, #tpu.memory_space<vmem>>, vector<1x1x128xf32>
    %222 = vector.shape_cast %221 : vector<1x1x128xf32> to vector<1x128xf32>
    %223 = vector.broadcast %222 : vector<1x128xf32> to vector<8x128xf32>
    %224 = arith.subf %220, %223 : vector<8x128xf32>
    %225 = math.absf %224 : vector<8x128xf32>
    %226 = arith.addf %218, %225 : vector<8x128xf32>
    %c3_167 = arith.constant 3 : index
    %c0_168 = arith.constant 0 : index
    %c0_169 = arith.constant 0 : index
    %227 = vector.load %arg1[%c3_167, %c0_168, %c0_169] : memref<4x16x128xf32, #tpu.memory_space<vmem>>, vector<1x8x128xf32>
    %228 = vector.shape_cast %227 : vector<1x8x128xf32> to vector<8x128xf32>
    %c3_170 = arith.constant 3 : index
    %c14_171 = arith.constant 14 : index
    %c0_172 = arith.constant 0 : index
    %229 = vector.load %arg1[%c3_170, %c14_171, %c0_172] : memref<4x16x128xf32, #tpu.memory_space<vmem>>, vector<1x1x128xf32>
    %230 = vector.shape_cast %229 : vector<1x1x128xf32> to vector<1x128xf32>
    %231 = vector.broadcast %230 : vector<1x128xf32> to vector<8x128xf32>
    %232 = arith.subf %228, %231 : vector<8x128xf32>
    %233 = math.absf %232 : vector<8x128xf32>
    %234 = arith.addf %226, %233 : vector<8x128xf32>
    %c6 = arith.constant 6 : index
    %c0_173 = arith.constant 0 : index
    %c0_174 = arith.constant 0 : index
    %235 = vector.load %arg2[%c6, %c0_173, %c0_174] : memref<8x8x128xf32, #tpu.memory_space<vmem>>, vector<1x8x128xf32>
    %236 = vector.shape_cast %235 : vector<1x8x128xf32> to vector<8x128xf32>
    %237 = vector.shape_cast %234 : vector<8x128xf32> to vector<1x8x128xf32>
    tpu.vector_store %arg2[%c6, %c0_173, %c0_174], %237 {strides = array<i32>} : memref<8x8x128xf32, #tpu.memory_space<vmem>>, vector<1x8x128xf32>,
    %c0_175 = arith.constant 0 : index
    %c0_176 = arith.constant 0 : index
    %c0_177 = arith.constant 0 : index
    %238 = vector.load %arg1[%c0_175, %c0_176, %c0_177] : memref<4x16x128xf32, #tpu.memory_space<vmem>>, vector<1x8x128xf32>
    %239 = vector.shape_cast %238 : vector<1x8x128xf32> to vector<8x128xf32>
    %c0_178 = arith.constant 0 : index
    %c15 = arith.constant 15 : index
    %c0_179 = arith.constant 0 : index
    %240 = vector.load %arg1[%c0_178, %c15, %c0_179] : memref<4x16x128xf32, #tpu.memory_space<vmem>>, vector<1x1x128xf32>
    %241 = vector.shape_cast %240 : vector<1x1x128xf32> to vector<1x128xf32>
    %242 = vector.broadcast %241 : vector<1x128xf32> to vector<8x128xf32>
    %243 = arith.subf %239, %242 : vector<8x128xf32>
    %244 = math.absf %243 : vector<8x128xf32>
    %c1_180 = arith.constant 1 : index
    %c0_181 = arith.constant 0 : index
    %c0_182 = arith.constant 0 : index
    %245 = vector.load %arg1[%c1_180, %c0_181, %c0_182] : memref<4x16x128xf32, #tpu.memory_space<vmem>>, vector<1x8x128xf32>
    %246 = vector.shape_cast %245 : vector<1x8x128xf32> to vector<8x128xf32>
    %c1_183 = arith.constant 1 : index
    %c15_184 = arith.constant 15 : index
    %c0_185 = arith.constant 0 : index
    %247 = vector.load %arg1[%c1_183, %c15_184, %c0_185] : memref<4x16x128xf32, #tpu.memory_space<vmem>>, vector<1x1x128xf32>
    %248 = vector.shape_cast %247 : vector<1x1x128xf32> to vector<1x128xf32>
    %249 = vector.broadcast %248 : vector<1x128xf32> to vector<8x128xf32>
    %250 = arith.subf %246, %249 : vector<8x128xf32>
    %251 = math.absf %250 : vector<8x128xf32>
    %252 = arith.addf %244, %251 : vector<8x128xf32>
    %c2_186 = arith.constant 2 : index
    %c0_187 = arith.constant 0 : index
    %c0_188 = arith.constant 0 : index
    %253 = vector.load %arg1[%c2_186, %c0_187, %c0_188] : memref<4x16x128xf32, #tpu.memory_space<vmem>>, vector<1x8x128xf32>
    %254 = vector.shape_cast %253 : vector<1x8x128xf32> to vector<8x128xf32>
    %c2_189 = arith.constant 2 : index
    %c15_190 = arith.constant 15 : index
    %c0_191 = arith.constant 0 : index
    %255 = vector.load %arg1[%c2_189, %c15_190, %c0_191] : memref<4x16x128xf32, #tpu.memory_space<vmem>>, vector<1x1x128xf32>
    %256 = vector.shape_cast %255 : vector<1x1x128xf32> to vector<1x128xf32>
    %257 = vector.broadcast %256 : vector<1x128xf32> to vector<8x128xf32>
    %258 = arith.subf %254, %257 : vector<8x128xf32>
    %259 = math.absf %258 : vector<8x128xf32>
    %260 = arith.addf %252, %259 : vector<8x128xf32>
    %c3_192 = arith.constant 3 : index
    %c0_193 = arith.constant 0 : index
    %c0_194 = arith.constant 0 : index
    %261 = vector.load %arg1[%c3_192, %c0_193, %c0_194] : memref<4x16x128xf32, #tpu.memory_space<vmem>>, vector<1x8x128xf32>
    %262 = vector.shape_cast %261 : vector<1x8x128xf32> to vector<8x128xf32>
    %c3_195 = arith.constant 3 : index
    %c15_196 = arith.constant 15 : index
    %c0_197 = arith.constant 0 : index
    %263 = vector.load %arg1[%c3_195, %c15_196, %c0_197] : memref<4x16x128xf32, #tpu.memory_space<vmem>>, vector<1x1x128xf32>
    %264 = vector.shape_cast %263 : vector<1x1x128xf32> to vector<1x128xf32>
    %265 = vector.broadcast %264 : vector<1x128xf32> to vector<8x128xf32>
    %266 = arith.subf %262, %265 : vector<8x128xf32>
    %267 = math.absf %266 : vector<8x128xf32>
    %268 = arith.addf %260, %267 : vector<8x128xf32>
    %c7 = arith.constant 7 : index
    %c0_198 = arith.constant 0 : index
    %c0_199 = arith.constant 0 : index
    %269 = vector.load %arg2[%c7, %c0_198, %c0_199] : memref<8x8x128xf32, #tpu.memory_space<vmem>>, vector<1x8x128xf32>
    %270 = vector.shape_cast %269 : vector<1x8x128xf32> to vector<8x128xf32>
    %271 = vector.shape_cast %268 : vector<8x128xf32> to vector<1x8x128xf32>
    tpu.vector_store %arg2[%c7, %c0_198, %c0_199], %271 {strides = array<i32>} : memref<8x8x128xf32, #tpu.memory_space<vmem>>, vector<1x8x128xf32>,
    return
  }
  func.func @transform_0(%arg0: i32) -> (i32, i32, i32) {
    %c0_i32 = arith.constant 0 : i32
    %c0_i32_0 = arith.constant 0 : i32
    %c0_i32_1 = arith.constant 0 : i32
    return %c0_i32, %c0_i32_0, %arg0 : i32, i32, i32
  }
  func.func @transform_1(%arg0: i32) -> (i32, i32, i32) {
    %c0_i32 = arith.constant 0 : i32
    %c0_i32_0 = arith.constant 0 : i32
    %c0_i32_1 = arith.constant 0 : i32
    return %c0_i32, %c0_i32_0, %arg0 : i32, i32, i32
  }
}

</mosaic_0001>

<llo_original>
// kernel: _l1_cdist_native_impl.1
$region0: #{_l1_cdist_native_impl.1}
  #allocation0 [shape = 'u32[]', space=smem, size = 0x4, offset = 0x4, fixed_abs, tag = 'smem constant byte address 0x4 - core index']
  #allocation1 [shape = 'u32[144,128]{1,0:T(1,128)}', space=vmem, size = 0x12000, scoped, tag = 'internal scratch']
  %s0 = inlined_call_operand.vmem [shape: f32[4,16,128], index: 0, kind: input, shape index: {}]
  %s1 = inlined_call_operand.hbm [shape: f32[8,8,128], index: 1, kind: output, shape index: {}]
  %s2 = sld [smem:[#allocation0]]
  $region14: #{_l1_cdist_native_impl.1} parent=0
    _
  %s4 = ssub.s32 1, %s2
  %s5 = scalar_select 0, %s4, %s2
  $region1: #{_l1_cdist_native_impl.1} parent=0
    #allocation2 [shape = 'u8[32768]{0}', space=vmem, size = 0x8000, scoped, tag = 'output window, operand 0, single buffered']
    #allocation3 [shape = 's32[1]{0}', space=sflag, size = 0x4, scoped, tag = 'scoped memory for _l1_cdist_native_impl.1']
    %6 = vsyncpa [#allocation3], 0
    // Predicated region
    $region2: #{_l1_cdist_native_impl.1} parent=1 // pred_check
      _
    $region3: #{_l1_cdist_native_impl.1} parent=1 // pred_check_branch
      %8 = sbr.rel (0) target = $region5
    $region4: #{_l1_cdist_native_impl.1} parent=1 // pred_region
      _
    $region5: #{_l1_cdist_native_impl.1} parent=1 // pred_fallthru
      _
    %v9 = vld [vmem:[%s0] sm:$0xff]
    %v10 = vld [vmem:[%s0 + $0x8] sm:$0x1]
    %v11 = vlaneseq
    %v12 = vshrl.u32 %v11, 7
    %v13 = vsub.s32 0, %v12
    %v14 = vrot.slane %v10, %v13
    %v15 = vsub.f32 %v9, %v14
    %v16 = vand.u32 2147483647, %v15
    %s17 = scalar_lea.vmem %s0, 16
    %v18 = vld [vmem:[%s17] sm:$0xff]
    %v19 = vld [vmem:[%s17 + $0x8] sm:$0x1]
    %v20 = vlaneseq
    %v21 = vshrl.u32 %v20, 7
    %v22 = vsub.s32 0, %v21
    %v23 = vrot.slane %v19, %v22
    %v24 = vsub.f32 %v18, %v23
    %v25 = vand.u32 2147483647, %v24
    %v26 = vadd.f32 %v16, %v25
    %s27 = scalar_lea.vmem %s0, 32
    %v28 = vld [vmem:[%s27] sm:$0xff]
    %v29 = vld [vmem:[%s27 + $0x8] sm:$0x1]
    %v30 = vlaneseq
    %v31 = vshrl.u32 %v30, 7
    %v32 = vsub.s32 0, %v31
    %v33 = vrot.slane %v29, %v32
    %v34 = vsub.f32 %v28, %v33
    %v35 = vand.u32 2147483647, %v34
    %v36 = vadd.f32 %v26, %v35
    %s37 = scalar_lea.vmem %s0, 48
    %v38 = vld [vmem:[%s37] sm:$0xff]
    %v39 = vld [vmem:[%s37 + $0x8] sm:$0x1]
    %v40 = vlaneseq
    %v41 = vshrl.u32 %v40, 7
    %v42 = vsub.s32 0, %v41
    %v43 = vrot.slane %v39, %v42
    %v44 = vsub.f32 %v38, %v43
    %v45 = vand.u32 2147483647, %v44
    %v46 = vadd.f32 %v36, %v45
    %47 = vst [vmem:[#allocation2] sm:$0xff] %v46
    %v48 = vld [vmem:[%s0] sm:$0xff]
    %v49 = vld [vmem:[%s0 + $0x9] sm:$0x1]
    %v50 = vlaneseq
    %v51 = vshrl.u32 %v50, 7
    %v52 = vsub.s32 0, %v51
    %v53 = vrot.slane %v49, %v52
    %v54 = vsub.f32 %v48, %v53
    %v55 = vand.u32 2147483647, %v54
    %v56 = vld [vmem:[%s17] sm:$0xff]
    %v57 = vld [vmem:[%s17 + $0x9] sm:$0x1]
    %v58 = vlaneseq
    %v59 = vshrl.u32 %v58, 7
    %v60 = vsub.s32 0, %v59
    %v61 = vrot.slane %v57, %v60
    %v62 = vsub.f32 %v56, %v61
    %v63 = vand.u32 2147483647, %v62
    %v64 = vadd.f32 %v55, %v63
    %v65 = vld [vmem:[%s27] sm:$0xff]
    %v66 = vld [vmem:[%s27 + $0x9] sm:$0x1]
    %v67 = vlaneseq
    %v68 = vshrl.u32 %v67, 7
    %v69 = vsub.s32 0, %v68
    %v70 = vrot.slane %v66, %v69
    %v71 = vsub.f32 %v65, %v70
    %v72 = vand.u32 2147483647, %v71
    %v73 = vadd.f32 %v64, %v72
    %v74 = vld [vmem:[%s37] sm:$0xff]
    %v75 = vld [vmem:[%s37 + $0x9] sm:$0x1]
    %v76 = vlaneseq
    %v77 = vshrl.u32 %v76, 7
    %v78 = vsub.s32 0, %v77
    %v79 = vrot.slane %v75, %v78
    %v80 = vsub.f32 %v74, %v79
    %v81 = vand.u32 2147483647, %v80
    %v82 = vadd.f32 %v73, %v81
    %s83 = scalar_lea.vmem [#allocation2], 8
    %84 = vst [vmem:[%s83] sm:$0xff] %v82
    %v85 = vld [vmem:[%s0] sm:$0xff]
    %v86 = vld [vmem:[%s0 + $0xa] sm:$0x1]
    %v87 = vlaneseq
    %v88 = vshrl.u32 %v87, 7
    %v89 = vsub.s32 0, %v88
    %v90 = vrot.slane %v86, %v89
    %v91 = vsub.f32 %v85, %v90
    %v92 = vand.u32 2147483647, %v91
    %v93 = vld [vmem:[%s17] sm:$0xff]
    %v94 = vld [vmem:[%s17 + $0xa] sm:$0x1]
    %v95 = vlaneseq
    %v96 = vshrl.u32 %v95, 7
    %v97 = vsub.s32 0, %v96
    %v98 = vrot.slane %v94, %v97
    %v99 = vsub.f32 %v93, %v98
    %v100 = vand.u32 2147483647, %v99
    %v101 = vadd.f32 %v92, %v100
    %v102 = vld [vmem:[%s27] sm:$0xff]
    %v103 = vld [vmem:[%s27 + $0xa] sm:$0x1]
    %v104 = vlaneseq
    %v105 = vshrl.u32 %v104, 7
    %v106 = vsub.s32 0, %v105
    %v107 = vrot.slane %v103, %v106
    %v108 = vsub.f32 %v102, %v107
    %v109 = vand.u32 2147483647, %v108
    %v110 = vadd.f32 %v101, %v109
    %v111 = vld [vmem:[%s37] sm:$0xff]
    %v112 = vld [vmem:[%s37 + $0xa] sm:$0x1]
    %v113 = vlaneseq
    %v114 = vshrl.u32 %v113, 7
    %v115 = vsub.s32 0, %v114
    %v116 = vrot.slane %v112, %v115
    %v117 = vsub.f32 %v111, %v116
    %v118 = vand.u32 2147483647, %v117
    %v119 = vadd.f32 %v110, %v118
    %s120 = scalar_lea.vmem [#allocation2], 16
    %121 = vst [vmem:[%s120] sm:$0xff] %v119
    %v122 = vld [vmem:[%s0] sm:$0xff]
    %v123 = vld [vmem:[%s0 + $0xb] sm:$0x1]
    %v124 = vlaneseq
    %v125 = vshrl.u32 %v124, 7
    %v126 = vsub.s32 0, %v125
    %v127 = vrot.slane %v123, %v126
    %v128 = vsub.f32 %v122, %v127
    %v129 = vand.u32 2147483647, %v128
    %v130 = vld [vmem:[%s17] sm:$0xff]
    %v131 = vld [vmem:[%s17 + $0xb] sm:$0x1]
    %v132 = vlaneseq
    %v133 = vshrl.u32 %v132, 7
    %v134 = vsub.s32 0, %v133
    %v135 = vrot.slane %v131, %v134
    %v136 = vsub.f32 %v130, %v135
    %v137 = vand.u32 2147483647, %v136
    %v138 = vadd.f32 %v129, %v137
    %v139 = vld [vmem:[%s27] sm:$0xff]
    %v140 = vld [vmem:[%s27 + $0xb] sm:$0x1]
    %v141 = vlaneseq
    %v142 = vshrl.u32 %v141, 7
    %v143 = vsub.s32 0, %v142
    %v144 = vrot.slane %v140, %v143
    %v145 = vsub.f32 %v139, %v144
    %v146 = vand.u32 2147483647, %v145
    %v147 = vadd.f32 %v138, %v146
    %v148 = vld [vmem:[%s37] sm:$0xff]
    %v149 = vld [vmem:[%s37 + $0xb] sm:$0x1]
    %v150 = vlaneseq
    %v151 = vshrl.u32 %v150, 7
    %v152 = vsub.s32 0, %v151
    %v153 = vrot.slane %v149, %v152
    %v154 = vsub.f32 %v148, %v153
    %v155 = vand.u32 2147483647, %v154
    %v156 = vadd.f32 %v147, %v155
    %s157 = scalar_lea.vmem [#allocation2], 24
    %158 = vst [vmem:[%s157] sm:$0xff] %v156
    %v159 = vld [vmem:[%s0] sm:$0xff]
    %v160 = vld [vmem:[%s0 + $0xc] sm:$0x1]
    %v161 = vlaneseq
    %v162 = vshrl.u32 %v161, 7
    %v163 = vsub.s32 0, %v162
    %v164 = vrot.slane %v160, %v163
    %v165 = vsub.f32 %v159, %v164
    %v166 = vand.u32 2147483647, %v165
    %v167 = vld [vmem:[%s17] sm:$0xff]
    %v168 = vld [vmem:[%s17 + $0xc] sm:$0x1]
    %v169 = vlaneseq
    %v170 = vshrl.u32 %v169, 7
    %v171 = vsub.s32 0, %v170
    %v172 = vrot.slane %v168, %v171
    %v173 = vsub.f32 %v167, %v172
    %v174 = vand.u32 2147483647, %v173
    %v175 = vadd.f32 %v166, %v174
    %v176 = vld [vmem:[%s27] sm:$0xff]
    %v177 = vld [vmem:[%s27 + $0xc] sm:$0x1]
    %v178 = vlaneseq
    %v179 = vshrl.u32 %v178, 7
    %v180 = vsub.s32 0, %v179
    %v181 = vrot.slane %v177, %v180
    %v182 = vsub.f32 %v176, %v181
    %v183 = vand.u32 2147483647, %v182
    %v184 = vadd.f32 %v175, %v183
    %v185 = vld [vmem:[%s37] sm:$0xff]
    %v186 = vld [vmem:[%s37 + $0xc] sm:$0x1]
    %v187 = vlaneseq
    %v188 = vshrl.u32 %v187, 7
    %v189 = vsub.s32 0, %v188
    %v190 = vrot.slane %v186, %v189
    %v191 = vsub.f32 %v185, %v190
    %v192 = vand.u32 2147483647, %v191
    %v193 = vadd.f32 %v184, %v192
    %s194 = scalar_lea.vmem [#allocation2], 32
    %195 = vst [vmem:[%s194] sm:$0xff] %v193
    %v196 = vld [vmem:[%s0] sm:$0xff]
    %v197 = vld [vmem:[%s0 + $0xd] sm:$0x1]
    %v198 = vlaneseq
    %v199 = vshrl.u32 %v198, 7
    %v200 = vsub.s32 0, %v199
    %v201 = vrot.slane %v197, %v200
    %v202 = vsub.f32 %v196, %v201
    %v203 = vand.u32 2147483647, %v202
    %v204 = vld [vmem:[%s17] sm:$0xff]
    %v205 = vld [vmem:[%s17 + $0xd] sm:$0x1]
    %v206 = vlaneseq
    %v207 = vshrl.u32 %v206, 7
    %v208 = vsub.s32 0, %v207
    %v209 = vrot.slane %v205, %v208
    %v210 = vsub.f32 %v204, %v209
    %v211 = vand.u32 2147483647, %v210
    %v212 = vadd.f32 %v203, %v211
    %v213 = vld [vmem:[%s27] sm:$0xff]
    %v214 = vld [vmem:[%s27 + $0xd] sm:$0x1]
    %v215 = vlaneseq
    %v216 = vshrl.u32 %v215, 7
    %v217 = vsub.s32 0, %v216
    %v218 = vrot.slane %v214, %v217
    %v219 = vsub.f32 %v213, %v218
    %v220 = vand.u32 2147483647, %v219
    %v221 = vadd.f32 %v212, %v220
    %v222 = vld [vmem:[%s37] sm:$0xff]
    %v223 = vld [vmem:[%s37 + $0xd] sm:$0x1]
    %v224 = vlaneseq
    %v225 = vshrl.u32 %v224, 7
    %v226 = vsub.s32 0, %v225
    %v227 = vrot.slane %v223, %v226
    %v228 = vsub.f32 %v222, %v227
    %v229 = vand.u32 2147483647, %v228
    %v230 = vadd.f32 %v221, %v229
    %s231 = scalar_lea.vmem [#allocation2], 40
    %232 = vst [vmem:[%s231] sm:$0xff] %v230
    %v233 = vld [vmem:[%s0] sm:$0xff]
    %v234 = vld [vmem:[%s0 + $0xe] sm:$0x1]
    %v235 = vlaneseq
    %v236 = vshrl.u32 %v235, 7
    %v237 = vsub.s32 0, %v236
    %v238 = vrot.slane %v234, %v237
    %v239 = vsub.f32 %v233, %v238
    %v240 = vand.u32 2147483647, %v239
    %v241 = vld [vmem:[%s17] sm:$0xff]
    %v242 = vld [vmem:[%s17 + $0xe] sm:$0x1]
    %v243 = vlaneseq
    %v244 = vshrl.u32 %v243, 7
    %v245 = vsub.s32 0, %v244
    %v246 = vrot.slane %v242, %v245
    %v247 = vsub.f32 %v241, %v246
    %v248 = vand.u32 2147483647, %v247
    %v249 = vadd.f32 %v240, %v248
    %v250 = vld [vmem:[%s27] sm:$0xff]
    %v251 = vld [vmem:[%s27 + $0xe] sm:$0x1]
    %v252 = vlaneseq
    %v253 = vshrl.u32 %v252, 7
    %v254 = vsub.s32 0, %v253
    %v255 = vrot.slane %v251, %v254
    %v256 = vsub.f32 %v250, %v255
    %v257 = vand.u32 2147483647, %v256
    %v258 = vadd.f32 %v249, %v257
    %v259 = vld [vmem:[%s37] sm:$0xff]
    %v260 = vld [vmem:[%s37 + $0xe] sm:$0x1]
    %v261 = vlaneseq
    %v262 = vshrl.u32 %v261, 7
    %v263 = vsub.s32 0, %v262
    %v264 = vrot.slane %v260, %v263
    %v265 = vsub.f32 %v259, %v264
    %v266 = vand.u32 2147483647, %v265
    %v267 = vadd.f32 %v258, %v266
    %s268 = scalar_lea.vmem [#allocation2], 48
    %269 = vst [vmem:[%s268] sm:$0xff] %v267
    %v270 = vld [vmem:[%s0] sm:$0xff]
    %v271 = vld [vmem:[%s0 + $0xf] sm:$0x1]
    %v272 = vlaneseq
    %v273 = vshrl.u32 %v272, 7
    %v274 = vsub.s32 0, %v273
    %v275 = vrot.slane %v271, %v274
    %v276 = vsub.f32 %v270, %v275
    %v277 = vand.u32 2147483647, %v276
    %v278 = vld [vmem:[%s17] sm:$0xff]
    %v279 = vld [vmem:[%s17 + $0xf] sm:$0x1]
    %v280 = vlaneseq
    %v281 = vshrl.u32 %v280, 7
    %v282 = vsub.s32 0, %v281
    %v283 = vrot.slane %v279, %v282
    %v284 = vsub.f32 %v278, %v283
    %v285 = vand.u32 2147483647, %v284
    %v286 = vadd.f32 %v277, %v285
    %v287 = vld [vmem:[%s27] sm:$0xff]
    %v288 = vld [vmem:[%s27 + $0xf] sm:$0x1]
    %v289 = vlaneseq
    %v290 = vshrl.u32 %v289, 7
    %v291 = vsub.s32 0, %v290
    %v292 = vrot.slane %v288, %v291
    %v293 = vsub.f32 %v287, %v292
    %v294 = vand.u32 2147483647, %v293
    %v295 = vadd.f32 %v286, %v294
    %v296 = vld [vmem:[%s37] sm:$0xff]
    %v297 = vld [vmem:[%s37 + $0xf] sm:$0x1]
    %v298 = vlaneseq
    %v299 = vshrl.u32 %v298, 7
    %v300 = vsub.s32 0, %v299
    %v301 = vrot.slane %v297, %v300
    %v302 = vsub.f32 %v296, %v301
    %v303 = vand.u32 2147483647, %v302
    %v304 = vadd.f32 %v295, %v303
    %s305 = scalar_lea.vmem [#allocation2], 56
    %306 = vst [vmem:[%s305] sm:$0xff] %v304
    // Predicated region
    $region6: #{_l1_cdist_native_impl.1} parent=1 // pred_check
      _
    $region7: #{_l1_cdist_native_impl.1} parent=1 // pred_check_branch
      %308 = sbr.rel (0) target = $region9
    $region8: #{_l1_cdist_native_impl.1} parent=1 // pred_region
      %s310 = ssub.s32 1024, 1024
      %311 = vsyncadd [#allocation3], %s310
      %s312 = sshll.u32 [#allocation2], 4
      %s313 = int_to_ptr.vmem [resolvable:$true] %s312
      %318 = dma.vmem_to_hbm [thread:$0]  %s313, 1024, %s1, [#allocation3], 128, 128, 8
    $region9: #{_l1_cdist_native_impl.1} parent=1 // pred_fallthru
      _
    // Predicated region
    $region10: #{_l1_cdist_native_impl.1} parent=1 // pred_check
      _
    $region11: #{_l1_cdist_native_impl.1} parent=1 // pred_check_branch
      %320 = sbr.rel (0) target = $region13
    $region12: #{_l1_cdist_native_impl.1} parent=1 // pred_region
      %321 = dma.done [#allocation3], 1024
    $region13: #{_l1_cdist_native_impl.1} parent=1 // pred_fallthru
      _
    %322 = vsyncpa [#allocation3], 1

</llo_original>
